<compile_context>
chip_gen: v5e
topology: v5e:2x2
jax: 0.10.0
libtpu: 0.0.40
codegen_flags: <defaults>
</compile_context>

<pallas_src>
import numpy as np

import jax
import jax.numpy as jnp
from jax import lax
from jax.experimental import pallas as pl
from jax.experimental.pallas import tpu as pltpu


def _make_msr_kernel(taps, b, H, p):
    """Bakes every static quantity (taps, b, sizes) into the kernel closure."""
    G = 2 * p + 1
    assert all(len(g) == G for g in taps)
    use_div = abs(float(b) - 10.0) < 1e-12
    ln_b_over_ln10 = float(np.log(float(b)) / np.log(10.0))

    def kernel(x_ref, mask_ref, out_ref):
        x = x_ref[...]                         # (Hp, Lp) f32, zero-padded both axes
        Lp = x.shape[1]

        # ---- W box window (unit weights, zero pad): symmetric lane rolls ----
        # Per-image zero padding in the lane layout guarantees every tap of a
        # valid (center) lane stays inside its own image's padded span, so no
        # masks are needed and wrap-around only touches don't-care lanes.
        hsum = x
        for d in range(1, p + 1):
            hsum = hsum + pltpu.roll(x, shift=d, axis=1) \
                        + pltpu.roll(x, shift=Lp - d, axis=1)

        # ---- per-scale gaussian along H: G weighted static row slices --------
        xc = x[p:p + H, :]                     # the real image rows
        if not use_div:
            log_xc = jnp.log(xc)               # hoisted once, generic-b path only

        acc = jnp.zeros((H, Lp), jnp.float32)
        for g in taps:                         # statically unrolled over scales
            blurred = g[0] * hsum[0:H, :]
            for i in range(1, G):
                blurred = blurred + g[i] * hsum[i:i + H, :]
            if use_div:
                # b == 10: b ** (log10(x) - log10(blur)) == x / blur  (no EUP work)
                acc = acc + xc / blurred
            else:
                acc = acc + jnp.exp((log_xc - jnp.log(blurred)) * ln_b_over_ln10)

        # ---- global min/max normalization over valid (non-pad) lanes ---------
        valid = mask_ref[...] > 0.0
        rmin = jnp.min(jnp.where(valid, acc, jnp.inf))
        rmax = jnp.max(jnp.where(valid, acc, -jnp.inf))
        out_ref[...] = (acc - rmin) / (rmax - rmin)

    return kernel


def multi_scale_retinex(img, sigma_list, G, b):
    assert G % 2 == 1, "odd Gaussian kernel size expected (PyTorch uses padding=(G-1)//2)"
    img = img.astype(jnp.float32)
    N, C, H, W = img.shape
    M = N * C
    p = (G - 1) // 2
    Wp = W + 2 * p                                    # per-image padded width
    Hp = ((H + 2 * p + 7) // 8) * 8                   # padded height, 8-sublane aligned
    Lp = ((M * Wp + 127) // 128) * 128                # lane-dense (multiple of 128)

    # Static gaussian taps per sigma (baked into the kernel as Python floats).
    t = np.arange(G, dtype=np.float64) - (G - 1) / 2.0
    taps = []
    for sigma in sigma_list:
        g = np.exp(-t ** 2 / (2.0 * float(sigma) ** 2))
        g = g / g.sum()
        taps.append(tuple(float(v) for v in g))

    # Lane-dense layout (H, N*C, W) with per-image zero padding on both axes:
    #   rows [p, p+H) are real, cols (per image) [p, p+W) are real.
    x2 = jnp.transpose(img, (2, 0, 1, 3)).reshape(H, M, W)
    x2 = jnp.pad(x2, ((p, Hp - H - p), (0, 0), (p, p)))
    x2 = x2.reshape(Hp, M * Wp)
    x2 = jnp.pad(x2, ((0, 0), (0, Lp - M * Wp)))      # tail zeros to a 128 multiple

    # Host-built validity mask (center lanes only) for the global min/max.
    lane = np.arange(Lp)
    wpos = lane % Wp
    valid = (lane < M * Wp) & (wpos >= p) & (wpos < p + W)
    mask = jnp.asarray(np.broadcast_to(valid[None, :], (H, Lp)).astype(np.float32))

    kernel = _make_msr_kernel(taps, b, H=H, p=p)

    # Tiny resident set (a handful of (Hp, Lp) f32 planes); 32 MiB is far above
    # need and below every generation's physical VMEM (v7x: 64 MiB).
    vmem_bytes = 32 * 1024 * 1024

    out2 = pl.pallas_call(
        kernel,
        out_shape=jax.ShapeDtypeStruct((H, Lp), jnp.float32),
        in_specs=[pl.BlockSpec(memory_space=pltpu.MemorySpace.VMEM),   # padded image
                  pl.BlockSpec(memory_space=pltpu.MemorySpace.VMEM)],  # lane mask
        out_specs=pl.BlockSpec(memory_space=pltpu.MemorySpace.VMEM),
        compiler_params=pltpu.CompilerParams(vmem_limit_bytes=vmem_bytes),
    )(x2, mask)

    # Drop padded lanes and restore NCHW.
    out = out2[:, :M * Wp].reshape(H, M, Wp)[:, :, p:p + W]
    return out.reshape(H, N, C, W).transpose(1, 2, 0, 3)


# ------------------ pure-JAX reference (for correctness check) ------------------
def _msr_reference(img, sigma_list, G, b):
    p = (G - 1) // 2
    t = jnp.arange(G, dtype=jnp.float32) - (G - 1) / 2.0
    result = jnp.zeros_like(img)
    for sigma in sigma_list:
        g = jnp.exp(-t ** 2 / (2.0 * float(sigma) ** 2))
        g = g / jnp.sum(g)
        w = jnp.tile(g.reshape(1, 1, G, 1), (img.shape[1], 1, 1, G))   # w[c,0,i,j] = g[i]
        blurred = lax.conv_general_dilated(
            img, w, window_strides=(1, 1), padding=[(p, p), (p, p)],
            dimension_numbers=("NCHW", "OIHW", "NCHW"),
            feature_group_count=img.shape[1],
            precision=lax.Precision.HIGHEST)
        diff = jnp.log10(img) - jnp.log10(blurred)
        result = result + jnp.float32(b) ** diff
    return (result - jnp.min(result)) / (jnp.max(result) - jnp.min(result))


if __name__ == "__main__":
    key = jax.random.PRNGKey(0)
    N, C, H, W = 2, 3, 16, 16        # module's Conv2d is hard-wired to 3 channels
    # strictly positive input (log10 in the forward pass)
    img = jax.random.uniform(key, (N, C, H, W), dtype=jnp.float32,
                             minval=0.1, maxval=1.0)
    sigma_list = [1.0, 2.0, 4.0]
    G = 5
    b = 10.0

    out = multi_scale_retinex(img, sigma_list, G, b)
    out = jax.block_until_ready(out)

    ref = _msr_reference(img, sigma_list, G, b)
    np.testing.assert_allclose(np.asarray(out), np.asarray(ref), rtol=2e-3, atol=2e-3)

    print("KERNEL_OK")
</pallas_src>

<mosaic_0001>
module attributes {stable_mosaic.version = 11 : i64} {
  func.func @kernel(%arg0: memref<24x128xf32, #tpu.memory_space<vmem>>, %arg1: memref<16x128xf32, #tpu.memory_space<vmem>>, %arg2: memref<16x128xf32, #tpu.memory_space<vmem>>) attributes {dimension_semantics = [], scalar_prefetch = 0 : i64, scratch_operands = 0 : i64, tpu.core_type = #tpu.core_type<tc>} {
    %c0 = arith.constant 0 : index
    %c0_0 = arith.constant 0 : index
    %0 = vector.load %arg0[%c0, %c0_0] : memref<24x128xf32, #tpu.memory_space<vmem>>, vector<24x128xf32>
    %c1_i32 = arith.constant 1 : i32
    %1 = tpu.dynamic_rotate %0 by %c1_i32 dim 1 : vector<24x128xf32>, i32 -> vector<24x128xf32>
    %2 = arith.addf %0, %1 : vector<24x128xf32>
    %c127_i32 = arith.constant 127 : i32
    %3 = tpu.dynamic_rotate %0 by %c127_i32 dim 1 : vector<24x128xf32>, i32 -> vector<24x128xf32>
    %4 = arith.addf %2, %3 : vector<24x128xf32>
    %c2_i32 = arith.constant 2 : i32
    %5 = tpu.dynamic_rotate %0 by %c2_i32 dim 1 : vector<24x128xf32>, i32 -> vector<24x128xf32>
    %6 = arith.addf %4, %5 : vector<24x128xf32>
    %c126_i32 = arith.constant 126 : i32
    %7 = tpu.dynamic_rotate %0 by %c126_i32 dim 1 : vector<24x128xf32>, i32 -> vector<24x128xf32>
    %8 = arith.addf %6, %7 : vector<24x128xf32>
    %9 = vector.extract_strided_slice %0 {offsets = [2, 0], sizes = [16, 128], strides = [1, 1]} : vector<24x128xf32> to vector<16x128xf32>
    %cst = arith.constant 0.000000e+00 : f32
    %10 = vector.broadcast %cst : f32 to vector<16x128xf32>
    %11 = vector.extract_strided_slice %8 {offsets = [0, 0], sizes = [16, 128], strides = [1, 1]} : vector<24x128xf32> to vector<16x128xf32>
    %cst_1 = arith.constant 0.054488685 : f32
    %12 = vector.broadcast %cst_1 : f32 to vector<16x128xf32>
    %13 = arith.mulf %12, %11 : vector<16x128xf32>
    %14 = vector.extract_strided_slice %8 {offsets = [1, 0], sizes = [16, 128], strides = [1, 1]} : vector<24x128xf32> to vector<16x128xf32>
    %cst_2 = arith.constant 0.244201347 : f32
    %15 = vector.broadcast %cst_2 : f32 to vector<16x128xf32>
    %16 = arith.mulf %15, %14 : vector<16x128xf32>
    %17 = arith.addf %13, %16 : vector<16x128xf32>
    %18 = vector.extract_strided_slice %8 {offsets = [2, 0], sizes = [16, 128], strides = [1, 1]} : vector<24x128xf32> to vector<16x128xf32>
    %cst_3 = arith.constant 0.402619958 : f32
    %19 = vector.broadcast %cst_3 : f32 to vector<16x128xf32>
    %20 = arith.mulf %19, %18 : vector<16x128xf32>
    %21 = arith.addf %17, %20 : vector<16x128xf32>
    %22 = vector.extract_strided_slice %8 {offsets = [3, 0], sizes = [16, 128], strides = [1, 1]} : vector<24x128xf32> to vector<16x128xf32>
    %cst_4 = arith.constant 0.244201347 : f32
    %23 = vector.broadcast %cst_4 : f32 to vector<16x128xf32>
    %24 = arith.mulf %23, %22 : vector<16x128xf32>
    %25 = arith.addf %21, %24 : vector<16x128xf32>
    %26 = vector.extract_strided_slice %8 {offsets = [4, 0], sizes = [16, 128], strides = [1, 1]} : vector<24x128xf32> to vector<16x128xf32>
    %cst_5 = arith.constant 0.054488685 : f32
    %27 = vector.broadcast %cst_5 : f32 to vector<16x128xf32>
    %28 = arith.mulf %27, %26 : vector<16x128xf32>
    %29 = arith.addf %25, %28 : vector<16x128xf32>
    %30 = arith.divf %9, %29 : vector<16x128xf32>
    %31 = arith.addf %10, %30 : vector<16x128xf32>
    %32 = vector.extract_strided_slice %8 {offsets = [0, 0], sizes = [16, 128], strides = [1, 1]} : vector<24x128xf32> to vector<16x128xf32>
    %cst_6 = arith.constant 0.152469143 : f32
    %33 = vector.broadcast %cst_6 : f32 to vector<16x128xf32>
    %34 = arith.mulf %33, %32 : vector<16x128xf32>
    %35 = vector.extract_strided_slice %8 {offsets = [1, 0], sizes = [16, 128], strides = [1, 1]} : vector<24x128xf32> to vector<16x128xf32>
    %cst_7 = arith.constant 0.221841291 : f32
    %36 = vector.broadcast %cst_7 : f32 to vector<16x128xf32>
    %37 = arith.mulf %36, %35 : vector<16x128xf32>
    %38 = arith.addf %34, %37 : vector<16x128xf32>
    %39 = vector.extract_strided_slice %8 {offsets = [2, 0], sizes = [16, 128], strides = [1, 1]} : vector<24x128xf32> to vector<16x128xf32>
    %cst_8 = arith.constant 0.251379132 : f32
    %40 = vector.broadcast %cst_8 : f32 to vector<16x128xf32>
    %41 = arith.mulf %40, %39 : vector<16x128xf32>
    %42 = arith.addf %38, %41 : vector<16x128xf32>
    %43 = vector.extract_strided_slice %8 {offsets = [3, 0], sizes = [16, 128], strides = [1, 1]} : vector<24x128xf32> to vector<16x128xf32>
    %cst_9 = arith.constant 0.221841291 : f32
    %44 = vector.broadcast %cst_9 : f32 to vector<16x128xf32>
    %45 = arith.mulf %44, %43 : vector<16x128xf32>
    %46 = arith.addf %42, %45 : vector<16x128xf32>
    %47 = vector.extract_strided_slice %8 {offsets = [4, 0], sizes = [16, 128], strides = [1, 1]} : vector<24x128xf32> to vector<16x128xf32>
    %cst_10 = arith.constant 0.152469143 : f32
    %48 = vector.broadcast %cst_10 : f32 to vector<16x128xf32>
    %49 = arith.mulf %48, %47 : vector<16x128xf32>
    %50 = arith.addf %46, %49 : vector<16x128xf32>
    %51 = arith.divf %9, %50 : vector<16x128xf32>
    %52 = arith.addf %31, %51 : vector<16x128xf32>
    %53 = vector.extract_strided_slice %8 {offsets = [0, 0], sizes = [16, 128], strides = [1, 1]} : vector<24x128xf32> to vector<16x128xf32>
    %cst_11 = arith.constant 0.187627167 : f32
    %54 = vector.broadcast %cst_11 : f32 to vector<16x128xf32>
    %55 = arith.mulf %54, %53 : vector<16x128xf32>
    %56 = vector.extract_strided_slice %8 {offsets = [1, 0], sizes = [16, 128], strides = [1, 1]} : vector<24x128xf32> to vector<16x128xf32>
    %cst_12 = arith.constant 0.206068128 : f32
    %57 = vector.broadcast %cst_12 : f32 to vector<16x128xf32>
    %58 = arith.mulf %57, %56 : vector<16x128xf32>
    %59 = arith.addf %55, %58 : vector<16x128xf32>
    %60 = vector.extract_strided_slice %8 {offsets = [2, 0], sizes = [16, 128], strides = [1, 1]} : vector<24x128xf32> to vector<16x128xf32>
    %cst_13 = arith.constant 0.212609425 : f32
    %61 = vector.broadcast %cst_13 : f32 to vector<16x128xf32>
    %62 = arith.mulf %61, %60 : vector<16x128xf32>
    %63 = arith.addf %59, %62 : vector<16x128xf32>
    %64 = vector.extract_strided_slice %8 {offsets = [3, 0], sizes = [16, 128], strides = [1, 1]} : vector<24x128xf32> to vector<16x128xf32>
    %cst_14 = arith.constant 0.206068128 : f32
    %65 = vector.broadcast %cst_14 : f32 to vector<16x128xf32>
    %66 = arith.mulf %65, %64 : vector<16x128xf32>
    %67 = arith.addf %63, %66 : vector<16x128xf32>
    %68 = vector.extract_strided_slice %8 {offsets = [4, 0], sizes = [16, 128], strides = [1, 1]} : vector<24x128xf32> to vector<16x128xf32>
    %cst_15 = arith.constant 0.187627167 : f32
    %69 = vector.broadcast %cst_15 : f32 to vector<16x128xf32>
    %70 = arith.mulf %69, %68 : vector<16x128xf32>
    %71 = arith.addf %67, %70 : vector<16x128xf32>
    %72 = arith.divf %9, %71 : vector<16x128xf32>
    %73 = arith.addf %52, %72 : vector<16x128xf32>
    %c0_16 = arith.constant 0 : index
    %c0_17 = arith.constant 0 : index
    %74 = vector.load %arg1[%c0_16, %c0_17] : memref<16x128xf32, #tpu.memory_space<vmem>>, vector<16x128xf32>
    %cst_18 = arith.constant 0.000000e+00 : f32
    %75 = vector.broadcast %cst_18 : f32 to vector<16x128xf32>
    %76 = arith.cmpf ogt, %74, %75 : vector<16x128xf32>
    %cst_19 = arith.constant 0x7F800000 : f32
    %77 = vector.broadcast %cst_19 : f32 to vector<16x128xf32>
    %78 = arith.select %76, %73, %77 : vector<16x128xi1>, vector<16x128xf32>
    %79 = vector.shape_cast %78 : vector<16x128xf32> to vector<1x16x128xf32>
    %cst_20 = arith.constant dense<0x7F800000> : vector<1xf32>
    %80 = vector.multi_reduction <minimumf>, %79, %cst_20 [1, 2] : vector<1x16x128xf32> to vector<1xf32>
    %81 = vector.shape_cast %80 : vector<1xf32> to vector<1x1x1xf32>
    %82 = vector.extract %81[0, 0, 0] : f32 from vector<1x1x1xf32>
    %cst_21 = arith.constant 0xFF800000 : f32
    %83 = vector.broadcast %cst_21 : f32 to vector<16x128xf32>
    %84 = arith.select %76, %73, %83 : vector<16x128xi1>, vector<16x128xf32>
    %85 = vector.shape_cast %84 : vector<16x128xf32> to vector<1x16x128xf32>
    %cst_22 = arith.constant dense<0xFF800000> : vector<1xf32>
    %86 = vector.multi_reduction <maximumf>, %85, %cst_22 [1, 2] : vector<1x16x128xf32> to vector<1xf32>
    %87 = vector.shape_cast %86 : vector<1xf32> to vector<1x1x1xf32>
    %88 = vector.extract %87[0, 0, 0] : f32 from vector<1x1x1xf32>
    %89 = vector.broadcast %82 : f32 to vector<16x128xf32>
    %90 = arith.subf %73, %89 : vector<16x128xf32>
    %91 = arith.subf %88, %82 : f32
    %92 = vector.broadcast %91 : f32 to vector<16x128xf32>
    %93 = arith.divf %90, %92 : vector<16x128xf32>
    %c0_23 = arith.constant 0 : index
    %c0_24 = arith.constant 0 : index
    %94 = vector.load %arg2[%c0_23, %c0_24] : memref<16x128xf32, #tpu.memory_space<vmem>>, vector<16x128xf32>
    tpu.vector_store %arg2[%c0_23, %c0_24], %93 {strides = array<i32>} : memref<16x128xf32, #tpu.memory_space<vmem>>, vector<16x128xf32>,
    return
  }
}

</mosaic_0001>

<llo_original>
// kernel: tpu_custom_call.1
$region0: #{tpu_custom_call.1}
  #allocation0 [shape = 'u32[]', space=smem, size = 0x4, offset = 0x4, fixed_abs, tag = 'smem constant byte address 0x4 - core index']
  #allocation1 [shape = 'u32[72,128]{1,0:T(1,128)}', space=vmem, size = 0x9000, scoped, tag = 'internal scratch']
  %s0 = inlined_call_operand.hbm [shape: f32[24,128], index: 0, kind: input, shape index: {}]
  %s1 = inlined_call_operand.hbm [shape: f32[16,128], index: 1, kind: input, shape index: {}]
  %s2 = inlined_call_operand.hbm [shape: f32[16,128], index: 2, kind: output, shape index: {}]
  %s3 = sld [smem:[#allocation0]]
  $region26: #{tpu_custom_call.1} parent=0
    _
  %s5 = ssub.s32 1, %s3
  %s6 = scalar_select 0, %s5, %s3
  $region1: #{tpu_custom_call.1} parent=0
    #allocation2 [shape = 'u8[12288]{0}', space=vmem, size = 0x3000, scoped, tag = 'input window, operand 0, single buffered']
    #allocation3 [shape = 's32[1]{0}', space=sflag, size = 0x4, scoped, tag = 'scoped memory for tpu_custom_call.1']
    #allocation4 [shape = 's32[1]{0}', space=sflag, size = 0x4, scoped, tag = 'scoped memory for tpu_custom_call.1']
    #allocation5 [shape = 'u8[8192]{0}', space=vmem, size = 0x2000, scoped, tag = 'input window, operand 1, single buffered']
    #allocation6 [shape = 's32[1]{0}', space=sflag, size = 0x4, scoped, tag = 'scoped memory for tpu_custom_call.1']
    #allocation7 [shape = 'u8[8192]{0}', space=vmem, size = 0x2000, scoped, tag = 'output window, operand 0, single buffered']
    %7 = vsyncpa [#allocation3], 0
    %8 = vsyncpa [#allocation6], 0
    %9 = vsyncpa [#allocation4], 0
    // Predicated region
    $region2: #{tpu_custom_call.1} parent=1 // pred_check
      _
    $region3: #{tpu_custom_call.1} parent=1 // pred_check_branch
      %11 = sbr.rel (0) target = $region5
    $region4: #{tpu_custom_call.1} parent=1 // pred_region
      %13 = vsyncadd [#allocation3], 0
      %s14 = sshll.u32 %s0, 4
      %s15 = int_to_ptr.hbm [resolvable:$true] %s14
      %s16 = sshll.u32 [#allocation2], 4
      %s17 = int_to_ptr.vmem [resolvable:$true] %s16
      %22 = dma.hbm_to_vmem [thread:$0]  %s15, 384, %s17, [#allocation3], 128, 128, 8
    $region5: #{tpu_custom_call.1} parent=1 // pred_fallthru
      _
    // Predicated region
    $region6: #{tpu_custom_call.1} parent=1 // pred_check
      _
    $region7: #{tpu_custom_call.1} parent=1 // pred_check_branch
      %24 = sbr.rel (0) target = $region9
    $region8: #{tpu_custom_call.1} parent=1 // pred_region
      %26 = vsyncadd [#allocation6], 0
      %s27 = sshll.u32 %s1, 4
      %s28 = int_to_ptr.hbm [resolvable:$true] %s27
      %s29 = sshll.u32 [#allocation5], 4
      %s30 = int_to_ptr.vmem [resolvable:$true] %s29
      %35 = dma.hbm_to_vmem [thread:$0]  %s28, 256, %s30, [#allocation6], 128, 128, 8
    $region9: #{tpu_custom_call.1} parent=1 // pred_fallthru
      _
    // Predicated region
    $region10: #{tpu_custom_call.1} parent=1 // pred_check
      _
    $region11: #{tpu_custom_call.1} parent=1 // pred_check_branch
      %37 = sbr.rel (0) target = $region13
    $region12: #{tpu_custom_call.1} parent=1 // pred_region
      %39 = dma.done [#allocation3], 384
    $region13: #{tpu_custom_call.1} parent=1 // pred_fallthru
      _
    // Predicated region
    $region14: #{tpu_custom_call.1} parent=1 // pred_check
      _
    $region15: #{tpu_custom_call.1} parent=1 // pred_check_branch
      %41 = sbr.rel (0) target = $region17
    $region16: #{tpu_custom_call.1} parent=1 // pred_region
      %43 = dma.done [#allocation6], 256
    $region17: #{tpu_custom_call.1} parent=1 // pred_fallthru
      _
    %v44 = vld [vmem:[#allocation2] sm:$0xff]
    %v45 = vld [vmem:[#allocation2 + $0x8] sm:$0xff]
    %v46 = vld [vmem:[#allocation2 + $0x10] sm:$0xff]
    %47 = vrot.lane.b32.xlu0 %v44, 1
    %v48 = vpop.permute.xlu0 %47
    %49 = vrot.lane.b32.xlu0 %v45, 1
    %v50 = vpop.permute.xlu0 %49
    %51 = vrot.lane.b32.xlu0 %v46, 1
    %v52 = vpop.permute.xlu0 %51
    %v53 = vadd.f32 %v44, %v48
    %v54 = vadd.f32 %v45, %v50
    %v55 = vadd.f32 %v46, %v52
    %56 = vrot.lane.b32.xlu0 %v44, 127
    %v57 = vpop.permute.xlu0 %56
    %58 = vrot.lane.b32.xlu0 %v45, 127
    %v59 = vpop.permute.xlu0 %58
    %60 = vrot.lane.b32.xlu0 %v46, 127
    %v61 = vpop.permute.xlu0 %60
    %v62 = vadd.f32 %v53, %v57
    %v63 = vadd.f32 %v54, %v59
    %v64 = vadd.f32 %v55, %v61
    %65 = vrot.lane.b32.xlu0 %v44, 2
    %v66 = vpop.permute.xlu0 %65
    %67 = vrot.lane.b32.xlu0 %v45, 2
    %v68 = vpop.permute.xlu0 %67
    %69 = vrot.lane.b32.xlu0 %v46, 2
    %v70 = vpop.permute.xlu0 %69
    %v71 = vadd.f32 %v62, %v66
    %v72 = vadd.f32 %v63, %v68
    %v73 = vadd.f32 %v64, %v70
    %74 = vrot.lane.b32.xlu0 %v44, 126
    %v75 = vpop.permute.xlu0 %74
    %76 = vrot.lane.b32.xlu0 %v45, 126
    %v77 = vpop.permute.xlu0 %76
    %78 = vrot.lane.b32.xlu0 %v46, 126
    %v79 = vpop.permute.xlu0 %78
    %v80 = vadd.f32 %v71, %v75
    %v81 = vadd.f32 %v72, %v77
    %v82 = vadd.f32 %v73, %v79
    %v83 = vmul.f32 %v80, 0.054488685
    %v84 = vmul.f32 %v81, 0.054488685
    %v85 = vmul.f32 %v80, 0.24420135
    %v86 = vmul.f32 %v81, 0.24420135
    %v87 = vmul.f32 %v82, 0.24420135
    %vm91 = vcmask 1046528
    %v92 = vrot.slane %v85, 1
    %v93 = vrot.slane %v86, 1
    %v94 = vsel %vm91, %v92, %v93
    %v95 = vrot.slane %v87, 1
    %v96 = vsel %vm91, %v93, %v95
    %v99 = vadd.f32 %v83, %v94
    %v100 = vadd.f32 %v84, %v96
    %v101 = vmul.f32 %v80, 0.40261996
    %v102 = vmul.f32 %v81, 0.40261996
    %v103 = vmul.f32 %v82, 0.40261996
    %vm107 = vcmask 1045504
    %v108 = vrot.slane %v101, 2
    %v109 = vrot.slane %v102, 2
    %v110 = vsel %vm107, %v108, %v109
    %v111 = vrot.slane %v103, 2
    %v112 = vsel %vm107, %v109, %v111
    %v115 = vadd.f32 %v99, %v110
    %v116 = vadd.f32 %v100, %v112
    %vm117 = vcmask 1044480
    %v118 = vrot.slane %v85, 3
    %v119 = vrot.slane %v86, 3
    %v120 = vsel %vm117, %v118, %v119
    %v121 = vrot.slane %v87, 3
    %v122 = vsel %vm117, %v119, %v121
    %v125 = vadd.f32 %v115, %v120
    %v126 = vadd.f32 %v116, %v122
    %v127 = vmul.f32 %v82, 0.054488685
    %vm131 = vcmask 1043456
    %v132 = vrot.slane %v83, 4
    %v133 = vrot.slane %v84, 4
    %v134 = vsel %vm131, %v132, %v133
    %v135 = vrot.slane %v127, 4
    %v136 = vsel %vm131, %v133, %v135
    %v139 = vadd.f32 %v125, %v134
    %v140 = vadd.f32 %v126, %v136
    %vm143 = vcmask 1041408
    %v144 = vrot.slane %v139, 6
    %v145 = vrot.slane %v140, 6
    %v146 = vsel %vm143, %v144, %v145
    %v150 = vrcp.pop %v144
    %v151 = vmul.f32 %v144, %v150
    %v152 = vsub.f32 1.0, %v151
    %v153 = vmul.f32 %v150, %v152
    %v154 = vadd.f32 %v150, %v153
    %vm155 = vweird.f32 %v144
    %vm156 = vweird.f32 %v150
    %vm157 = vmor %vm155, %vm156
    %v158 = vsel %vm157, %v150, %v154
    %v159 = vand.u32 2147483647, %v144
    %vm160 = vcmp.eq.f32.partialorder %v159, 8.507059e+37
    %v161 = vand.u32 %v144, 2147483648
    %v162 = vor.u32 1.1754944e-38, %v161
    %v163 = vsel %vm160, %v162, %v158
    %v164 = vmul.f32 %v44, %v163
    %v165 = vrcp.pop %v146
    %v166 = vmul.f32 %v146, %v165
    %v167 = vsub.f32 1.0, %v166
    %v168 = vmul.f32 %v165, %v167
    %v169 = vadd.f32 %v165, %v168
    %vm170 = vweird.f32 %v146
    %vm171 = vweird.f32 %v165
    %vm172 = vmor %vm170, %vm171
    %v173 = vsel %vm172, %v165, %v169
    %v174 = vand.u32 2147483647, %v146
    %vm175 = vcmp.eq.f32.partialorder %v174, 8.507059e+37
    %v176 = vand.u32 %v146, 2147483648
    %v177 = vor.u32 1.1754944e-38, %v176
    %v178 = vsel %vm175, %v177, %v173
    %v179 = vmul.f32 %v45, %v178
    %v180 = vrcp.pop %v145
    %v181 = vmul.f32 %v145, %v180
    %v182 = vsub.f32 1.0, %v181
    %v183 = vmul.f32 %v180, %v182
    %v184 = vadd.f32 %v180, %v183
    %vm185 = vweird.f32 %v145
    %vm186 = vweird.f32 %v180
    %vm187 = vmor %vm185, %vm186
    %v188 = vsel %vm187, %v180, %v184
    %v189 = vand.u32 2147483647, %v145
    %vm190 = vcmp.eq.f32.partialorder %v189, 8.507059e+37
    %v191 = vand.u32 %v145, 2147483648
    %v192 = vor.u32 1.1754944e-38, %v191
    %v193 = vsel %vm190, %v192, %v188
    %v194 = vmul.f32 %v46, %v193
    %v195 = vadd.f32 %v164, 0.0
    %v196 = vadd.f32 %v179, 0.0
    %v197 = vadd.f32 %v194, 0.0
    %v198 = vmul.f32 %v80, 0.15246914
    %v199 = vmul.f32 %v81, 0.15246914
    %v200 = vmul.f32 %v80, 0.22184129
    %v201 = vmul.f32 %v81, 0.22184129
    %v202 = vmul.f32 %v82, 0.22184129
    %v206 = vrot.slane %v200, 1
    %v207 = vrot.slane %v201, 1
    %v208 = vsel %vm91, %v206, %v207
    %v209 = vrot.slane %v202, 1
    %v210 = vsel %vm91, %v207, %v209
    %v213 = vadd.f32 %v198, %v208
    %v214 = vadd.f32 %v199, %v210
    %v215 = vmul.f32 %v80, 0.25137913
    %v216 = vmul.f32 %v81, 0.25137913
    %v217 = vmul.f32 %v82, 0.25137913
    %v221 = vrot.slane %v215, 2
    %v222 = vrot.slane %v216, 2
    %v223 = vsel %vm107, %v221, %v222
    %v224 = vrot.slane %v217, 2
    %v225 = vsel %vm107, %v222, %v224
    %v228 = vadd.f32 %v213, %v223
    %v229 = vadd.f32 %v214, %v225
    %v230 = vrot.slane %v200, 3
    %v231 = vrot.slane %v201, 3
    %v232 = vsel %vm117, %v230, %v231
    %v233 = vrot.slane %v202, 3
    %v234 = vsel %vm117, %v231, %v233
    %v237 = vadd.f32 %v228, %v232
    %v238 = vadd.f32 %v229, %v234
    %v239 = vmul.f32 %v82, 0.15246914
    %v243 = vrot.slane %v198, 4
    %v244 = vrot.slane %v199, 4
    %v245 = vsel %vm131, %v243, %v244
    %v246 = vrot.slane %v239, 4
    %v247 = vsel %vm131, %v244, %v246
    %v250 = vadd.f32 %v237, %v245
    %v251 = vadd.f32 %v238, %v247
    %v254 = vrot.slane %v250, 6
    %v255 = vrot.slane %v251, 6
    %v256 = vsel %vm143, %v254, %v255
    %v260 = vrcp.pop %v254
    %v261 = vmul.f32 %v254, %v260
    %v262 = vsub.f32 1.0, %v261
    %v263 = vmul.f32 %v260, %v262
    %v264 = vadd.f32 %v260, %v263
    %vm265 = vweird.f32 %v254
    %vm266 = vweird.f32 %v260
    %vm267 = vmor %vm265, %vm266
    %v268 = vsel %vm267, %v260, %v264
    %v269 = vand.u32 2147483647, %v254
    %vm270 = vcmp.eq.f32.partialorder %v269, 8.507059e+37
    %v271 = vand.u32 %v254, 2147483648
    %v272 = vor.u32 1.1754944e-38, %v271
    %v273 = vsel %vm270, %v272, %v268
    %v274 = vmul.f32 %v44, %v273
    %v275 = vrcp.pop %v256
    %v276 = vmul.f32 %v256, %v275
    %v277 = vsub.f32 1.0, %v276
    %v278 = vmul.f32 %v275, %v277
    %v279 = vadd.f32 %v275, %v278
    %vm280 = vweird.f32 %v256
    %vm281 = vweird.f32 %v275
    %vm282 = vmor %vm280, %vm281
    %v283 = vsel %vm282, %v275, %v279
    %v284 = vand.u32 2147483647, %v256
    %vm285 = vcmp.eq.f32.partialorder %v284, 8.507059e+37
    %v286 = vand.u32 %v256, 2147483648
    %v287 = vor.u32 1.1754944e-38, %v286
    %v288 = vsel %vm285, %v287, %v283
    %v289 = vmul.f32 %v45, %v288
    %v290 = vrcp.pop %v255
    %v291 = vmul.f32 %v255, %v290
    %v292 = vsub.f32 1.0, %v291
    %v293 = vmul.f32 %v290, %v292
    %v294 = vadd.f32 %v290, %v293
    %vm295 = vweird.f32 %v255
    %vm296 = vweird.f32 %v290
    %vm297 = vmor %vm295, %vm296
    %v298 = vsel %vm297, %v290, %v294
    %v299 = vand.u32 2147483647, %v255
    %vm300 = vcmp.eq.f32.partialorder %v299, 8.507059e+37
    %v301 = vand.u32 %v255, 2147483648
    %v302 = vor.u32 1.1754944e-38, %v301
    %v303 = vsel %vm300, %v302, %v298
    %v304 = vmul.f32 %v46, %v303
    %v305 = vadd.f32 %v195, %v274
    %v306 = vadd.f32 %v196, %v289
    %v307 = vadd.f32 %v197, %v304
    %v308 = vmul.f32 %v80, 0.18762717
    %v309 = vmul.f32 %v81, 0.18762717
    %v310 = vmul.f32 %v80, 0.20606813
    %v311 = vmul.f32 %v81, 0.20606813
    %v312 = vmul.f32 %v82, 0.20606813
    %v316 = vrot.slane %v310, 1
    %v317 = vrot.slane %v311, 1
    %v318 = vsel %vm91, %v316, %v317
    %v319 = vrot.slane %v312, 1
    %v320 = vsel %vm91, %v317, %v319
    %v323 = vadd.f32 %v308, %v318
    %v324 = vadd.f32 %v309, %v320
    %v325 = vmul.f32 %v80, 0.21260943
    %v326 = vmul.f32 %v81, 0.21260943
    %v327 = vmul.f32 %v82, 0.21260943
    %v331 = vrot.slane %v325, 2
    %v332 = vrot.slane %v326, 2
    %v333 = vsel %vm107, %v331, %v332
    %v334 = vrot.slane %v327, 2
    %v335 = vsel %vm107, %v332, %v334
    %v338 = vadd.f32 %v323, %v333
    %v339 = vadd.f32 %v324, %v335
    %v340 = vrot.slane %v310, 3
    %v341 = vrot.slane %v311, 3
    %v342 = vsel %vm117, %v340, %v341
    %v343 = vrot.slane %v312, 3
    %v344 = vsel %vm117, %v341, %v343
    %v347 = vadd.f32 %v338, %v342
    %v348 = vadd.f32 %v339, %v344
    %v349 = vmul.f32 %v82, 0.18762717
    %v353 = vrot.slane %v308, 4
    %v354 = vrot.slane %v309, 4
    %v355 = vsel %vm131, %v353, %v354
    %v356 = vrot.slane %v349, 4
    %v357 = vsel %vm131, %v354, %v356
    %v360 = vadd.f32 %v347, %v355
    %v361 = vadd.f32 %v348, %v357
    %v364 = vrot.slane %v360, 6
    %v365 = vrot.slane %v361, 6
    %v366 = vsel %vm143, %v364, %v365
    %v370 = vrcp.pop %v364
    %v371 = vmul.f32 %v364, %v370
    %v372 = vsub.f32 1.0, %v371
    %v373 = vmul.f32 %v370, %v372
    %v374 = vadd.f32 %v370, %v373
    %vm375 = vweird.f32 %v364
    %vm376 = vweird.f32 %v370
    %vm377 = vmor %vm375, %vm376
    %v378 = vsel %vm377, %v370, %v374
    %v379 = vand.u32 2147483647, %v364
    %vm380 = vcmp.eq.f32.partialorder %v379, 8.507059e+37
    %v381 = vand.u32 %v364, 2147483648
    %v382 = vor.u32 1.1754944e-38, %v381
    %v383 = vsel %vm380, %v382, %v378
    %v384 = vmul.f32 %v44, %v383
    %v385 = vrcp.pop %v366
    %v386 = vmul.f32 %v366, %v385
    %v387 = vsub.f32 1.0, %v386
    %v388 = vmul.f32 %v385, %v387
    %v389 = vadd.f32 %v385, %v388
    %vm390 = vweird.f32 %v366
    %vm391 = vweird.f32 %v385
    %vm392 = vmor %vm390, %vm391
    %v393 = vsel %vm392, %v385, %v389
    %v394 = vand.u32 2147483647, %v366
    %vm395 = vcmp.eq.f32.partialorder %v394, 8.507059e+37
    %v396 = vand.u32 %v366, 2147483648
    %v397 = vor.u32 1.1754944e-38, %v396
    %v398 = vsel %vm395, %v397, %v393
    %v399 = vmul.f32 %v45, %v398
    %v400 = vrcp.pop %v365
    %v401 = vmul.f32 %v365, %v400
    %v402 = vsub.f32 1.0, %v401
    %v403 = vmul.f32 %v400, %v402
    %v404 = vadd.f32 %v400, %v403
    %vm405 = vweird.f32 %v365
    %vm406 = vweird.f32 %v400
    %vm407 = vmor %vm405, %vm406
    %v408 = vsel %vm407, %v400, %v404
    %v409 = vand.u32 2147483647, %v365
    %vm410 = vcmp.eq.f32.partialorder %v409, 8.507059e+37
    %v411 = vand.u32 %v365, 2147483648
    %v412 = vor.u32 1.1754944e-38, %v411
    %v413 = vsel %vm410, %v412, %v408
    %v414 = vmul.f32 %v46, %v413
    %v415 = vadd.f32 %v305, %v384
    %v416 = vadd.f32 %v306, %v399
    %v417 = vadd.f32 %v307, %v414
    %v418 = vld [vmem:[#allocation5] sm:$0xff]
    %v419 = vld [vmem:[#allocation5 + $0x8] sm:$0xff]
    %vm420 = vcmp.gt.f32.partialorder %v418, 0.0
    %vm421 = vcmp.gt.f32.partialorder %v419, 0.0
    %v425 = vrot.slane %v415, 2
    %v426 = vrot.slane %v416, 2
    %v427 = vsel %vm107, %v425, %v426
    %v428 = vrot.slane %v417, 2
    %v429 = vsel %vm107, %v426, %v428
    %v432 = vsel %vm420, %v427, inf
    %v433 = vsel %vm421, %v429, inf
    %v434 = vmin.f32 %v432, %v433
    %435 = vmin.xlane.f32.xlu0 %v434
    %v436 = vpop.xlane.xlu0 %435
    %v437 = vrot.slane %v436, 4
    %v438 = vmin.f32 %v436, %v437
    %v439 = vrot.slane %v438, 2
    %v440 = vmin.f32 %v438, %v439
    %v441 = vrot.slane %v440, 1
    %v442 = vmin.f32 %v440, %v441
    %s443 = vtos %v442
    %v444 = vsel %vm420, %v427, -inf
    %v445 = vsel %vm421, %v429, -inf
    %v446 = vmax.f32 %v444, %v445
    %447 = vmax.xlane.f32.xlu0 %v446
    %v448 = vpop.xlane.xlu0 %447
    %v449 = vrot.slane %v448, 4
    %v450 = vmax.f32 %v448, %v449
    %v451 = vrot.slane %v450, 2
    %v452 = vmax.f32 %v450, %v451
    %v453 = vrot.slane %v452, 1
    %v454 = vmax.f32 %v452, %v453
    %s455 = vtos %v454
    %v456 = vstv %s443
    %v457 = vsub.f32 %v415, %v456
    %v458 = vsub.f32 %v416, %v456
    %v459 = vsub.f32 %v417, %v456
    %s460 = ssub.f32 %s455, %s443
    %v461 = vstv %s460
    %v462 = vrcp.pop %v461
    %v463 = vmul.f32 %v461, %v462
    %v464 = vsub.f32 1.0, %v463
    %v465 = vmul.f32 %v462, %v464
    %v466 = vadd.f32 %v462, %v465
    %vm467 = vweird.f32 %v461
    %vm468 = vweird.f32 %v462
    %vm469 = vmor %vm467, %vm468
    %v470 = vsel %vm469, %v462, %v466
    %v471 = vand.u32 2147483647, %v461
    %vm472 = vcmp.eq.f32.partialorder %v471, 8.507059e+37
    %v473 = vand.u32 %v461, 2147483648
    %v474 = vor.u32 1.1754944e-38, %v473
    %v475 = vsel %vm472, %v474, %v470
    %v476 = vmul.f32 %v457, %v475
    %v477 = vmul.f32 %v458, %v475
    %v478 = vmul.f32 %v459, %v475
    %479 = vst [vmem:[#allocation7 - $0x2] sm:$0xfc] %v476
    %480 = vst [vmem:[#allocation7 + $0x6] sm:$0xff] %v477
    %481 = vst [vmem:[#allocation7 + $0xe] sm:$0x3] %v478
    // Predicated region
    $region18: #{tpu_custom_call.1} parent=1 // pred_check
      _
    $region19: #{tpu_custom_call.1} parent=1 // pred_check_branch
      %483 = sbr.rel (0) target = $region21
    $region20: #{tpu_custom_call.1} parent=1 // pred_region
      %485 = vsyncadd [#allocation4], 0
      %s486 = sshll.u32 [#allocation7], 4
      %s487 = int_to_ptr.vmem [resolvable:$true] %s486
      %s488 = sshll.u32 %s2, 4
      %s489 = int_to_ptr.hbm [resolvable:$true] %s488
      %494 = dma.vmem_to_hbm [thread:$0]  %s487, 256, %s489, [#allocation4], 128, 128, 8
    $region21: #{tpu_custom_call.1} parent=1 // pred_fallthru
      _
    // Predicated region
    $region22: #{tpu_custom_call.1} parent=1 // pred_check
      _
    $region23: #{tpu_custom_call.1} parent=1 // pred_check_branch
      %496 = sbr.rel (0) target = $region25
    $region24: #{tpu_custom_call.1} parent=1 // pred_region
      %498 = dma.done [#allocation4], 256
    $region25: #{tpu_custom_call.1} parent=1 // pred_fallthru
      _
    %499 = vsyncpa [#allocation3], 1
    %500 = vsyncpa [#allocation6], 1
    %501 = vsyncpa [#allocation4], 1

</llo_original>
